<compile_context>
chip_gen: v7x
topology: tpu7x:2x2x1
jax: 0.10.0
libtpu: 0.0.40
codegen_flags: <defaults>
</compile_context>

<pallas_src>
import jax
import jax.numpy as jnp
from jax.experimental import pallas as pl
from jax.experimental.pallas import tpu as pltpu

IN_FEATURES = 768
OUT_FEATURES = 1


def _round_up(n, m):
    return ((n + m - 1) // m) * m


def _linear_kernel(x_ref, w_ref, b_ref, o_ref):
    # x_ref: [TB, 768] VMEM tile (pipelined over the batch grid axis), f32/bf16
    # w_ref: [1, 768]  VMEM, resident across all grid steps
    # b_ref: [1]       SMEM scalar
    # o_ref: [TB, 1]   VMEM output tile
    x = x_ref[...].astype(jnp.float32)          # upcast: f32 accumulation
    w = w_ref[...].astype(jnp.float32)          # [1, 768]
    # VPU elementwise multiply + XLU row reduction; avoids an N=1 MXU matmul.
    acc = jnp.sum(x * w, axis=-1, keepdims=True)  # [TB, 1] f32
    o_ref[...] = (acc + b_ref[0]).astype(o_ref.dtype)


def commonlit_regression_forward(x, weight, bias, *, block_b=1024,
                                 out_dtype=jnp.float32):
    """Eval-mode forward of Dropout(0.2) -> Linear(768, 1).

    x: [B, 768] (f32 or bf16), weight: [1, 768] f32, bias: [1] f32 -> [B, 1].
    Dropout (p=0.2) is identity at inference.
    """
    B, F = x.shape
    assert F == IN_FEATURES
    assert weight.shape == (OUT_FEATURES, IN_FEATURES)
    assert bias.shape == (OUT_FEATURES,)

    # Pad only to a sublane multiple (rare B % 8 != 0 corner case); never to a
    # full tile multiple -- the ragged trailing tile is handled by the cdiv
    # grid + Pallas boundary masking, so the common case moves zero extra bytes.
    b_pad = _round_up(max(B, 1), 8)
    x_in = x if b_pad == B else jnp.pad(x, ((0, b_pad - B), (0, 0)))

    # Tile selection: multiple of 8, capped at block_b, and capped so the batch
    # grid has >= 2 steps when possible (lets v7x's two TensorCores both get
    # work; a single extra grid step is noise on single-TC v5e/v6e).
    half = _round_up(pl.cdiv(b_pad, 2), 8)
    tb = max(8, min(block_b, half, b_pad))
    grid = (pl.cdiv(b_pad, tb),)

    in_bytes = jnp.dtype(x.dtype).itemsize
    cost = pl.CostEstimate(
        flops=2 * b_pad * IN_FEATURES,
        transcendentals=0,
        bytes_accessed=(b_pad * IN_FEATURES * in_bytes
                        + (IN_FEATURES + OUT_FEATURES) * 4
                        + b_pad * OUT_FEATURES * jnp.dtype(out_dtype).itemsize),
    )

    out = pl.pallas_call(
        _linear_kernel,
        out_shape=jax.ShapeDtypeStruct((b_pad, OUT_FEATURES), out_dtype),
        grid_spec=pltpu.PrefetchScalarGridSpec(
            num_scalar_prefetch=0,
            grid=grid,
            in_specs=[
                # x: tiled along batch -> DMA/compute overlap via pipelining.
                pl.BlockSpec((tb, IN_FEATURES), lambda i: (i, 0)),
                # weight kept as [1, 768]: resident across steps, no lane padding.
                pl.BlockSpec((OUT_FEATURES, IN_FEATURES), lambda i: (0, 0)),
                # bias: single scalar, read from SMEM on the scalar unit.
                pl.BlockSpec(memory_space=pltpu.MemorySpace.SMEM),
            ],
            out_specs=pl.BlockSpec((tb, OUT_FEATURES), lambda i: (i, 0)),
        ),
        compiler_params=pltpu.CompilerParams(
            # Independent batch tiles: allow megacore sharding on v7x.
            dimension_semantics=("parallel",),
        ),
        cost_estimate=cost,
    )(x_in, weight, bias)

    return out[:B]


def _init_params(key):
    # Match torch.nn.Linear default init: U(-1/sqrt(in), 1/sqrt(in)).
    k_w, k_b = jax.random.split(key)
    bound = 1.0 / (IN_FEATURES ** 0.5)
    weight = jax.random.uniform(
        k_w, (OUT_FEATURES, IN_FEATURES), jnp.float32, minval=-bound, maxval=bound
    )
    bias = jax.random.uniform(
        k_b, (OUT_FEATURES,), jnp.float32, minval=-bound, maxval=bound
    )
    return weight, bias


# TODO(synk): training-mode dropout (random masking + 1/(1-p) scaling) is not
# implemented; if added, generate the mask in-kernel with pltpu.prng_seed +
# pltpu.prng_random_bits instead of streaming a [B, 768] mask from HBM.

if __name__ == "__main__":
    key = jax.random.PRNGKey(0)
    k_x, k_x2, k_p = jax.random.split(key, 3)
    weight, bias = _init_params(k_p)

    # Case 1: small batch, single tile, f32.
    B1 = 8
    x1 = jax.random.normal(k_x, (B1, IN_FEATURES), jnp.float32)
    y1 = commonlit_regression_forward(x1, weight, bias)
    jax.block_until_ready(y1)
    y1_ref = x1 @ weight.T + bias
    assert y1.shape == (B1, OUT_FEATURES)
    assert jnp.allclose(y1, y1_ref, atol=1e-4, rtol=1e-4)

    # Case 2: batch not a multiple of 8 or of the tile -> exercises the tiny
    # pad-to-8 and the ragged trailing block (no pad-to-tile copy anymore).
    B2 = 20
    x2 = jax.random.normal(k_x2, (B2, IN_FEATURES), jnp.float32)
    y2 = commonlit_regression_forward(x2, weight, bias, block_b=16)
    jax.block_until_ready(y2)
    y2_ref = x2 @ weight.T + bias
    assert y2.shape == (B2, OUT_FEATURES)
    assert jnp.allclose(y2, y2_ref, atol=1e-4, rtol=1e-4)

    # Case 3: bf16 activations (halved HBM traffic); kernel upcasts and
    # accumulates in f32.
    x3 = x2.astype(jnp.bfloat16)
    y3 = commonlit_regression_forward(x3, weight, bias)
    jax.block_until_ready(y3)
    y3_ref = x3.astype(jnp.float32) @ weight.T + bias
    assert y3.shape == (B2, OUT_FEATURES)
    assert jnp.allclose(y3, y3_ref, atol=5e-2, rtol=5e-2)

    print("KERNEL_OK")
</pallas_src>

<mosaic_0001>
module attributes {stable_mosaic.version = 11 : i64} {
  func.func @_linear_kernel(%arg0: i32, %arg1: memref<8x768xf32, #tpu.memory_space<vmem>>, %arg2: memref<1x768xf32, #tpu.memory_space<vmem>>, %arg3: memref<1xf32, #tpu.memory_space<smem>>, %arg4: memref<8x1xf32, #tpu.memory_space<vmem>>) attributes {dimension_semantics = [#tpu.dimension_semantics<parallel>], iteration_bounds = array<i64: 1>, scalar_prefetch = 0 : i64, scratch_operands = 0 : i64, tpu.core_type = #tpu.core_type<tc>, window_params = [{transform_indices = @transform_0, window_bounds = array<i64: 8, 768>}, {pipeline_mode = #tpu.pipeline_mode<synchronous>, transform_indices = @transform_1, window_bounds = array<i64: 1, 768>}, {transform_indices = @transform_2, window_bounds = array<i64: 1>}, {transform_indices = @transform_3, window_bounds = array<i64: 8, 1>}]} {
    %c0 = arith.constant 0 : index
    %c0_0 = arith.constant 0 : index
    %0 = vector.load %arg1[%c0, %c0_0] : memref<8x768xf32, #tpu.memory_space<vmem>>, vector<8x768xf32>
    %c0_1 = arith.constant 0 : index
    %c0_2 = arith.constant 0 : index
    %1 = vector.load %arg2[%c0_1, %c0_2] : memref<1x768xf32, #tpu.memory_space<vmem>>, vector<1x768xf32>
    %2 = vector.broadcast %1 : vector<1x768xf32> to vector<8x768xf32>
    %3 = arith.mulf %0, %2 : vector<8x768xf32>
    %cst = arith.constant dense<0.000000e+00> : vector<8xf32>
    %4 = vector.multi_reduction <add>, %3, %cst [1] : vector<8x768xf32> to vector<8xf32>
    %5 = vector.shape_cast %4 : vector<8xf32> to vector<8x1xf32>
    %c0_3 = arith.constant 0 : index
    %6 = memref.load %arg3[%c0_3] : memref<1xf32, #tpu.memory_space<smem>>
    %7 = vector.broadcast %6 : f32 to vector<8x1xf32>
    %8 = arith.addf %5, %7 : vector<8x1xf32>
    %c0_4 = arith.constant 0 : index
    %c0_5 = arith.constant 0 : index
    %9 = vector.load %arg4[%c0_4, %c0_5] : memref<8x1xf32, #tpu.memory_space<vmem>>, vector<8x1xf32>
    tpu.vector_store %arg4[%c0_4, %c0_5], %8 {strides = array<i32>} : memref<8x1xf32, #tpu.memory_space<vmem>>, vector<8x1xf32>,
    return
  }
  func.func @transform_0(%arg0: i32) -> (i32, i32) {
    %c0_i32 = arith.constant 0 : i32
    %c0_i32_0 = arith.constant 0 : i32
    return %arg0, %c0_i32 : i32, i32
  }
  func.func @transform_1(%arg0: i32) -> (i32, i32) {
    %c0_i32 = arith.constant 0 : i32
    %c0_i32_0 = arith.constant 0 : i32
    %c0_i32_1 = arith.constant 0 : i32
    return %c0_i32, %c0_i32_0 : i32, i32
  }
  func.func @transform_2(%arg0: i32) -> i32 {
    %c0_i32 = arith.constant 0 : i32
    %c0_i32_0 = arith.constant 0 : i32
    return %c0_i32 : i32
  }
  func.func @transform_3(%arg0: i32) -> (i32, i32) {
    %c0_i32 = arith.constant 0 : i32
    %c0_i32_0 = arith.constant 0 : i32
    return %arg0, %c0_i32 : i32, i32
  }
}

</mosaic_0001>

<llo_original>
// kernel: tpu_custom_call.1
$region0: #{tpu_custom_call.1}
  #allocation0 [shape = 'u32[]', space=smem, size = 0x4, offset = 0x4, fixed_abs, tag = 'smem constant byte address 0x4 - core index']
  #allocation1 [shape = 'u32[144,128]{1,0:T(1,128)}', space=vmem, size = 0x12000, scoped, tag = 'internal scratch']
  #allocation2 [shape = 'f32[1]{0:T(128)S(6)}', space=smem, size = 0x200, scoped, tag = 'scoped memory for tpu_custom_call.1']
  %s0 = inlined_call_operand.hbm [shape: f32[8,768], index: 0, kind: input, shape index: {}]
  %s1 = inlined_call_operand.vmem [shape: f32[1,768], index: 1, kind: input, shape index: {}]
  %s2 = inlined_call_operand.<no memory space> [shape: f32[1], index: 2, kind: input, shape index: {}]
  %s3 = inlined_call_operand.vmem [shape: f32[8,1], index: 3, kind: output, shape index: {}]
  %s4 = sld [smem:[#allocation0]]
  $region26: #{tpu_custom_call.1} parent=0
    _
  %s6 = ssub.s32 1, %s4
  %s7 = scalar_select 0, %s6, %s4
  %8 = sst [smem:[#allocation2]] %s2
  $region1: #{tpu_custom_call.1} parent=0
    #allocation3 [shape = 'u8[24576]{0}', space=vmem, size = 0x6000, scoped, tag = 'input window, operand 0, single buffered']
    #allocation4 [shape = 's32[1]{0}', space=sflag, size = 0x4, scoped, tag = 'scoped memory for tpu_custom_call.1']
    %9 = vsyncpa [#allocation4], 0
    // Predicated region
    $region2: #{tpu_custom_call.1} parent=1 // pred_check
      _
    $region3: #{tpu_custom_call.1} parent=1 // pred_check_branch
      %11 = sbr.rel (0) target = $region5
    $region4: #{tpu_custom_call.1} parent=1 // pred_region
      %s13 = ssub.s32 768, 768
      %14 = vsyncadd [#allocation4], %s13
      %s16 = sshll.u32 [#allocation3], 4
      %s17 = int_to_ptr.vmem [resolvable:$true] %s16
      %19 = dma.hbm_to_vmem [thread:$0]  %s0, 768, %s17, [#allocation4]
    $region5: #{tpu_custom_call.1} parent=1 // pred_fallthru
      _
    // Predicated region
    $region6: #{tpu_custom_call.1} parent=1 // pred_check
      _
    $region7: #{tpu_custom_call.1} parent=1 // pred_check_branch
      %21 = sbr.rel (0) target = $region9
    $region8: #{tpu_custom_call.1} parent=1 // pred_region
      _
    $region9: #{tpu_custom_call.1} parent=1 // pred_fallthru
      _
    // Predicated region
    $region10: #{tpu_custom_call.1} parent=1 // pred_check
      _
    $region11: #{tpu_custom_call.1} parent=1 // pred_check_branch
      %23 = sbr.rel (0) target = $region13
    $region12: #{tpu_custom_call.1} parent=1 // pred_region
      _
    $region13: #{tpu_custom_call.1} parent=1 // pred_fallthru
      _
    // Predicated region
    $region14: #{tpu_custom_call.1} parent=1 // pred_check
      _
    $region15: #{tpu_custom_call.1} parent=1 // pred_check_branch
      %25 = sbr.rel (0) target = $region17
    $region16: #{tpu_custom_call.1} parent=1 // pred_region
      %26 = dma.done [#allocation4], 768
    $region17: #{tpu_custom_call.1} parent=1 // pred_fallthru
      _
    %v27 = vld [vmem:[#allocation3] sm:$0xff]
    %v28 = vld [vmem:[#allocation3 + $0x8] sm:$0xff]
    %v29 = vld [vmem:[#allocation3 + $0x10] sm:$0xff]
    %v30 = vld [vmem:[#allocation3 + $0x18] sm:$0xff]
    %v31 = vld [vmem:[#allocation3 + $0x20] sm:$0xff]
    %v32 = vld [vmem:[#allocation3 + $0x28] sm:$0xff]
    %v33 = vld [vmem:[%s1] sm:$0x3f]
    %v35 = vlaneseq
    %v36 = vshrl.u32 %v35, 7
    %v37 = vsub.s32 0, %v36
    %v38 = vrot.slane %v33, %v37
    %v39 = vlaneseq
    %v40 = vshrl.u32 %v39, 7
    %v41 = vsub.s32 1, %v40
    %v42 = vrot.slane %v33, %v41
    %v43 = vlaneseq
    %v44 = vshrl.u32 %v43, 7
    %v45 = vsub.s32 2, %v44
    %v46 = vrot.slane %v33, %v45
    %v47 = vlaneseq
    %v48 = vshrl.u32 %v47, 7
    %v49 = vsub.s32 3, %v48
    %v50 = vrot.slane %v33, %v49
    %v51 = vlaneseq
    %v52 = vshrl.u32 %v51, 7
    %v53 = vsub.s32 4, %v52
    %v54 = vrot.slane %v33, %v53
    %v55 = vlaneseq
    %v56 = vshrl.u32 %v55, 7
    %v57 = vsub.s32 5, %v56
    %v58 = vrot.slane %v33, %v57
    %v65 = vmul.f32 %v27, %v38
    %v66 = vmul.f32 %v28, %v42
    %v67 = vmul.f32 %v29, %v46
    %v68 = vmul.f32 %v30, %v50
    %v69 = vmul.f32 %v31, %v54
    %v70 = vmul.f32 %v32, %v58
    %v71 = vadd.f32 %v65, %v66
    %v72 = vadd.f32 %v71, %v67
    %v73 = vadd.f32 %v72, %v68
    %v74 = vadd.f32 %v73, %v69
    %v75 = vadd.f32 %v74, %v70
    %76 = vadd.xlane.f32.xlu0 %v75
    %v77 = vpop.xlane.xlu0 %76
    %s78 = sld [smem:[#allocation2]]
    %v79 = vstv %s78
    %v80 = vadd.f32 %v77, %v79
    %vm81 = vcmask 7168
    %82 = vst.msk [vmem:[%s3] sm:$0xff] %vm81, %v80
    // Predicated region
    $region18: #{tpu_custom_call.1} parent=1 // pred_check
      _
    $region19: #{tpu_custom_call.1} parent=1 // pred_check_branch
      %84 = sbr.rel (0) target = $region21
    $region20: #{tpu_custom_call.1} parent=1 // pred_region
      _
    $region21: #{tpu_custom_call.1} parent=1 // pred_fallthru
      _
    // Predicated region
    $region22: #{tpu_custom_call.1} parent=1 // pred_check
      _
    $region23: #{tpu_custom_call.1} parent=1 // pred_check_branch
      %86 = sbr.rel (0) target = $region25
    $region24: #{tpu_custom_call.1} parent=1 // pred_region
      _
    $region25: #{tpu_custom_call.1} parent=1 // pred_fallthru
      _
    %87 = vsyncpa [#allocation4], 1

</llo_original>
